<compile_context>
chip_gen: v7x
topology: tpu7x:2x2x1
jax: 0.10.0
libtpu: 0.0.40
codegen_flags: <defaults>
</compile_context>

<pallas_src>
import jax
import jax.numpy as jnp
from jax import lax
from jax.experimental import pallas as pl
from jax.experimental.pallas import tpu as pltpu


def _round_up(x, m):
    return (x + m - 1) // m * m


# ------------------------------------------------------------------ kernel

def _gemm_bias_kernel(a_ref, w_ref, bias_ref, o_ref):
    """a_ref: (tm, Kp) compute-dtype pre-averaged patches
    w_ref:  (Kp, tn) compute-dtype weights (pool scale pre-folded)
    bias_ref: (1, tn) f32
    o_ref:  (tm, tn) f32
    One MXU matmul with f32 accumulation + f32 bias-add epilogue."""
    o_ref[...] = jnp.dot(a_ref[...], w_ref[...],
                         preferred_element_type=jnp.float32) + bias_ref[...]


# ------------------------------------------------------------------ glue

def _pooled_patches(x, kh, kw, pad):
    """x: (B, Cin, H, W) -> (B*OHp*OWp, Cin*kh*kw) rows, each row being the SUM
    over the 4 2x2-pool offsets of the im2col patch (the 1/4 scale is folded
    into the weights).  K ordering is (Cin, KH, KW), matching PyTorch's Conv2d
    weight flattening."""
    B, C, H, W = x.shape
    oh = H + 2 * pad - kh + 1
    ow = W + 2 * pad - kw + 1
    assert oh % 2 == 0 and ow % 2 == 0, "ConvMeanPool needs an even conv output"
    ohp, owp = oh // 2, ow // 2
    xp = jnp.pad(x, ((0, 0), (0, 0), (pad, pad), (pad, pad)))
    # y[b,c,r,s] = sum of the 2x2 window of xp anchored at (r,s)
    y = (xp[:, :, :-1, :-1] + xp[:, :, 1:, :-1]
         + xp[:, :, :-1, 1:] + xp[:, :, 1:, 1:])
    cols = []
    for ki in range(kh):
        for kj in range(kw):
            cols.append(y[:, :, ki:ki + 2 * ohp:2, kj:kj + 2 * owp:2])
    p = jnp.stack(cols, axis=2)                        # (B, C, kh*kw, ohp, owp)
    p = p.reshape(B, C * kh * kw, ohp * owp)
    a = p.transpose(0, 2, 1).reshape(B * ohp * owp, C * kh * kw)
    return a, ohp, owp


# ------------------------------------------------------------------ wrapper

def conv_mean_pool(x, w, b, *, compute_dtype=jnp.bfloat16):
    """ConvMeanPool forward.
    x: (B, Cin, H, W) f32; w: (Cout, Cin, KH, KW) f32; b: (Cout,) f32.
    Returns (B, Cout, OH//2, OW//2) f32 (same as the PyTorch module).
    NOTE: MXU operands are cast to `compute_dtype` (default bf16) with f32
    accumulation; pass compute_dtype=jnp.float32 for full f32-parity compute."""
    B = x.shape[0]
    cout, cin, kh, kw = w.shape
    pad = (kh - 1) // 2                    # MyConvo2d: padding = (kernel_size-1)//2

    a, ohp, owp = _pooled_patches(x, kh, kw, pad)
    mp, k = a.shape

    # lane-dense padding of K / N (exact: zero rows/cols contribute nothing)
    kp = _round_up(k, 128)
    n_pad = _round_up(cout, 128)
    tn = 256 if (n_pad % 256 == 0 and n_pad >= 256) else 128
    mp_pad = _round_up(mp, 128)            # pad M so every block is full-width

    a = jnp.pad(a, ((0, mp_pad - mp), (0, kp - k))).astype(compute_dtype)
    # fold the 1/4 pool scale into the (small) weight matrix
    wmat = w.reshape(cout, cin * kh * kw).T.astype(jnp.float32) * 0.25
    wmat = jnp.pad(wmat, ((0, kp - k), (0, n_pad - cout))).astype(compute_dtype)
    bias = jnp.pad(b.astype(jnp.float32), (0, n_pad - cout)).reshape(1, n_pad)

    # ---- generation-aware tile / VMEM budget --------------------------------
    try:
        vmem_cap = int(pltpu.get_tpu_info().vmem_capacity_bytes)
    except Exception:
        vmem_cap = 64 << 20                # conservative fallback (v7x-sized)
    itemsize = jnp.dtype(compute_dtype).itemsize
    a_budget = vmem_cap // 4               # ~32 MiB on v5e/v6e, ~16 MiB on v7x
    cap = max(128, (a_budget // (2 * kp * itemsize)) // 128 * 128)

    # largest tm in {1024,512,256,128} that fits the budget and divides mp_pad
    # -> no masked partial stores on the edge tile.
    tm = 128
    for cand in (1024, 512, 256, 128):
        if cand <= cap and cand <= mp_pad and mp_pad % cand == 0:
            tm = cand
            break

    # v7x has 2 TensorCores: make sure the ("parallel","parallel") grid has at
    # least 2 programs (negligible cost on single-TC v5e/v6e).
    if (mp_pad // tm) * (n_pad // tn) == 1 and tm >= 16:
        tm //= 2

    grid = (mp_pad // tm, n_pad // tn)     # i outer, j inner: A stays resident

    vmem = 2 * (tm * kp * itemsize + kp * tn * itemsize
                + tn * 4 + tm * tn * 4) + (2 << 20)
    vmem = int(min(max(vmem, 4 << 20), (vmem_cap * 3) // 4))

    out = pl.pallas_call(
        _gemm_bias_kernel,
        out_shape=jax.ShapeDtypeStruct((mp_pad, n_pad), jnp.float32),
        grid=grid,
        in_specs=[
            pl.BlockSpec((tm, kp), lambda i, j: (i, 0)),
            pl.BlockSpec((kp, tn), lambda i, j: (0, j)),
            pl.BlockSpec((1, tn), lambda i, j: (0, j)),
        ],
        out_specs=pl.BlockSpec((tm, tn), lambda i, j: (i, j)),
        compiler_params=pltpu.CompilerParams(
            dimension_semantics=("parallel", "parallel"),
            vmem_limit_bytes=vmem,
        ),
    )(a, wmat, bias)

    out = out[:mp, :cout]                  # drop M / lane padding (fused by XLA)
    # TODO(synk): NHWC-tolerant consumers can take out.reshape(B, ohp, owp, cout)
    # directly and skip this extra HBM round trip; kept for NCHW module parity.
    return out.reshape(B, ohp, owp, cout).transpose(0, 3, 1, 2)


# ------------------------------------------------------------------ demo

if __name__ == "__main__":
    key = jax.random.PRNGKey(0)
    kx, kw_, kb = jax.random.split(key, 3)
    B, Cin, H, W = 2, 4, 16, 16
    Cout, ksize = 8, 3

    x = jax.random.normal(kx, (B, Cin, H, W), jnp.float32)
    fan_in = Cin * ksize * ksize
    bound = 1.0 / (fan_in ** 0.5)          # PyTorch Conv2d default init bounds
    w = jax.random.uniform(kw_, (Cout, Cin, ksize, ksize), jnp.float32, -bound, bound)
    b = jax.random.uniform(kb, (Cout,), jnp.float32, -bound, bound)

    fwd = jax.jit(conv_mean_pool)
    out = jax.block_until_ready(fwd(x, w, b))

    # plain-JAX f32 reference of the PyTorch module (conv -> 2x2 mean pool)
    p = (ksize - 1) // 2
    ref_conv = lax.conv_general_dilated(
        x, w, window_strides=(1, 1), padding=[(p, p), (p, p)],
        dimension_numbers=("NCHW", "OIHW", "NCHW")) + b.reshape(1, Cout, 1, 1)
    ref = (ref_conv[:, :, ::2, ::2] + ref_conv[:, :, 1::2, ::2]
           + ref_conv[:, :, ::2, 1::2] + ref_conv[:, :, 1::2, 1::2]) / 4.0

    assert out.shape == (B, Cout, H // 2, W // 2), out.shape
    assert out.shape == ref.shape
    assert bool(jnp.all(jnp.isfinite(out)))
    err = float(jnp.max(jnp.abs(out - ref)))
    assert err < 5e-2, f"max abs err vs f32 reference: {err}"
    print("KERNEL_OK")
</pallas_src>

<mosaic_0001>
module attributes {stable_mosaic.version = 11 : i64} {
  func.func @_gemm_bias_kernel(%arg0: i32, %arg1: i32, %arg2: memref<64x128xbf16, #tpu.memory_space<vmem>>, %arg3: memref<128x128xbf16, #tpu.memory_space<vmem>>, %arg4: memref<1x128xf32, #tpu.memory_space<vmem>>, %arg5: memref<64x128xf32, #tpu.memory_space<vmem>>) attributes {dimension_semantics = [#tpu.dimension_semantics<parallel>, #tpu.dimension_semantics<parallel>], iteration_bounds = array<i64: 2, 1>, scalar_prefetch = 0 : i64, scratch_operands = 0 : i64, tpu.core_type = #tpu.core_type<tc>, window_params = [{transform_indices = @transform_0, window_bounds = array<i64: 64, 128>}, {transform_indices = @transform_1, window_bounds = array<i64: 128, 128>}, {transform_indices = @transform_2, window_bounds = array<i64: 1, 128>}, {transform_indices = @transform_3, window_bounds = array<i64: 64, 128>}]} {
    %c0 = arith.constant 0 : index
    %c0_0 = arith.constant 0 : index
    %0 = vector.load %arg2[%c0, %c0_0] : memref<64x128xbf16, #tpu.memory_space<vmem>>, vector<64x128xbf16>
    %c0_1 = arith.constant 0 : index
    %c0_2 = arith.constant 0 : index
    %1 = vector.load %arg3[%c0_1, %c0_2] : memref<128x128xbf16, #tpu.memory_space<vmem>>, vector<128x128xbf16>
    %cst = arith.constant dense<0.000000e+00> : vector<64x128xf32>
    %2 = tpu.matmul %0, %1, %cst {dimension_numbers = #tpu.dot_dimension_numbers<[1], [0], [0], [1], [0, 0, 1, 1], [], []>} : vector<64x128xbf16>, vector<128x128xbf16>, vector<64x128xf32> -> vector<64x128xf32>
    %c0_3 = arith.constant 0 : index
    %c0_4 = arith.constant 0 : index
    %3 = vector.load %arg4[%c0_3, %c0_4] : memref<1x128xf32, #tpu.memory_space<vmem>>, vector<1x128xf32>
    %4 = vector.broadcast %3 : vector<1x128xf32> to vector<64x128xf32>
    %5 = arith.addf %2, %4 : vector<64x128xf32>
    %c0_5 = arith.constant 0 : index
    %c0_6 = arith.constant 0 : index
    %6 = vector.load %arg5[%c0_5, %c0_6] : memref<64x128xf32, #tpu.memory_space<vmem>>, vector<64x128xf32>
    tpu.vector_store %arg5[%c0_5, %c0_6], %5 {strides = array<i32>} : memref<64x128xf32, #tpu.memory_space<vmem>>, vector<64x128xf32>,
    return
  }
  func.func @transform_0(%arg0: i32, %arg1: i32) -> (i32, i32) {
    %c0_i32 = arith.constant 0 : i32
    %c0_i32_0 = arith.constant 0 : i32
    return %arg0, %c0_i32 : i32, i32
  }
  func.func @transform_1(%arg0: i32, %arg1: i32) -> (i32, i32) {
    %c0_i32 = arith.constant 0 : i32
    %c0_i32_0 = arith.constant 0 : i32
    return %c0_i32, %arg1 : i32, i32
  }
  func.func @transform_2(%arg0: i32, %arg1: i32) -> (i32, i32) {
    %c0_i32 = arith.constant 0 : i32
    %c0_i32_0 = arith.constant 0 : i32
    return %c0_i32, %arg1 : i32, i32
  }
  func.func @transform_3(%arg0: i32, %arg1: i32) -> (i32, i32) {
    %c0_i32 = arith.constant 0 : i32
    return %arg0, %arg1 : i32, i32
  }
}

</mosaic_0001>

<llo_original>
// kernel: conv_mean_pool.1
$region0: #{conv_mean_pool.1}
  #allocation0 [shape = 'u32[]', space=smem, size = 0x4, offset = 0x4, fixed_abs, tag = 'smem constant byte address 0x4 - core index']
  #allocation1 [shape = 'u32[144,128]{1,0:T(1,128)}', space=vmem, size = 0x12000, scoped, tag = 'internal scratch']
  %s0 = inlined_call_operand.vmem [shape: bf16[128,128], index: 0, kind: input, shape index: {}]
  %s1 = inlined_call_operand.vmem [shape: bf16[128,128], index: 1, kind: input, shape index: {}]
  %s2 = inlined_call_operand.vmem [shape: f32[1,128], index: 2, kind: input, shape index: {}]
  %s3 = inlined_call_operand.vmem [shape: f32[128,128], index: 3, kind: output, shape index: {}]
  %s4 = sld [smem:[#allocation0]]
  $region45: #{conv_mean_pool.1} parent=0
    _
  %s6 = ssub.s32 1, %s4
  %s7 = scalar_select 0, %s6, %s4
  loop: start=0, step=1, limit=4
  $region2: #{conv_mean_pool.1} parent=0 // loop_pre_header
    _
  $region3: #{conv_mean_pool.1} parent=0 // loop_header
    %s9 = sphi 0, %s13
    %p10 = scmp.ge.s32.totalorder %s9, 4
    %s16 = sphi 0, %s28
    %s17 = sphi 0, %s24
    %s18 = sphi 0, %s16
    %s19 = sphi 0, %s17
    %s20 = sphi 0, %s18
    %s21 = sphi 0, %s19
    %s31 = sphi 0, %s33
    %s34 = sphi 0, %s31
    %s35 = sphi 0, %s34
    %s51 = sphi 0, %s35
    %s57 = sphi 0, %s59
    %s60 = sphi 0, %s57
    %s61 = sphi 0, %s60
    %s77 = sphi 0, %s61
    %s83 = sphi 0, %s85
    %s86 = sphi 0, %s83
    %s87 = sphi 0, %s86
    %s103 = sphi 0, %s87
    %s111 = sphi 0, %s113
    %s114 = sphi 0, %s111
    %s115 = sphi 0, %s114
    %s131 = sphi 0, %s115
  $region4: #{conv_mean_pool.1} parent=0 // loop_header_branch
    %12 = sbr.rel (%p10) target = $region8
  $region5: #{conv_mean_pool.1} parent=0 // loop_body
    %s14 = ssub.s32 %s9, 1
    %s15 = ssub.s32 %s9, 2
    %s22 = sadd.s32 1, %s17
    %p23 = scmp.ge.s32.totalorder %s22, 1
    %s24 = scalar_select %p23, 0, %s22
    %s25 = sadd.s32 1, %s16
    %s26 = scalar_select %p23, %s25, %s16
    %p27 = scmp.ge.s32.totalorder %s26, 2
    %s28 = scalar_select %p27, 0, %s26
    %s29 = ssub.s32 %s16, %s28
    %p30 = scmp.eq.s32.totalorder %s29, 0
    %s32 = sadd.s32 %s31, 1
    %s33 = scalar_select %p30, %s31, %s32
    %p36 = pneg %p30
    %p37 = scmp.eq.s32.totalorder %s9, 1
    %p38 = por %p36, %p37
    %p39 = scmp.ne.s32.totalorder %s31, %s34
    %p40 = scmp.eq.s32.totalorder %s9, 0
    %p41 = por %p39, %p40
    %p42 = scmp.ne.s32.totalorder %s31, %s34
    %p43 = scmp.eq.s32.totalorder %s14, 1
    %p44 = por %p42, %p43
    %p45 = scmp.ne.s32.totalorder %s34, %s35
    %p46 = scmp.eq.s32.totalorder %s14, 0
    %p47 = por %p45, %p46
    %p48 = scmp.ne.s32.totalorder %s34, %s35
    %p49 = scmp.eq.s32.totalorder %s15, 1
    %p50 = por %p48, %p49
    %p52 = scmp.ne.s32.totalorder %s35, %s51
    %p53 = scmp.eq.s32.totalorder %s15, 0
    %p54 = por %p52, %p53
    %s55 = ssub.s32 %s17, %s24
    %p56 = scmp.eq.s32.totalorder %s55, 0
    %s58 = sadd.s32 %s57, 1
    %s59 = scalar_select %p56, %s57, %s58
    %p62 = pneg %p56
    %p63 = scmp.eq.s32.totalorder %s9, 1
    %p64 = por %p62, %p63
    %p65 = scmp.ne.s32.totalorder %s57, %s60
    %p66 = scmp.eq.s32.totalorder %s9, 0
    %p67 = por %p65, %p66
    %p68 = scmp.ne.s32.totalorder %s57, %s60
    %p69 = scmp.eq.s32.totalorder %s14, 1
    %p70 = por %p68, %p69
    %p71 = scmp.ne.s32.totalorder %s60, %s61
    %p72 = scmp.eq.s32.totalorder %s14, 0
    %p73 = por %p71, %p72
    %p74 = scmp.ne.s32.totalorder %s60, %s61
    %p75 = scmp.eq.s32.totalorder %s15, 1
    %p76 = por %p74, %p75
    %p78 = scmp.ne.s32.totalorder %s61, %s77
    %p79 = scmp.eq.s32.totalorder %s15, 0
    %p80 = por %p78, %p79
    %s81 = ssub.s32 %s17, %s24
    %p82 = scmp.eq.s32.totalorder %s81, 0
    %s84 = sadd.s32 %s83, 1
    %s85 = scalar_select %p82, %s83, %s84
    %p88 = pneg %p82
    %p89 = scmp.eq.s32.totalorder %s9, 1
    %p90 = por %p88, %p89
    %p91 = scmp.ne.s32.totalorder %s83, %s86
    %p92 = scmp.eq.s32.totalorder %s9, 0
    %p93 = por %p91, %p92
    %p94 = scmp.ne.s32.totalorder %s83, %s86
    %p95 = scmp.eq.s32.totalorder %s14, 1
    %p96 = por %p94, %p95
    %p97 = scmp.ne.s32.totalorder %s86, %s87
    %p98 = scmp.eq.s32.totalorder %s14, 0
    %p99 = por %p97, %p98
    %p100 = scmp.ne.s32.totalorder %s86, %s87
    %p101 = scmp.eq.s32.totalorder %s15, 1
    %p102 = por %p100, %p101
    %p104 = scmp.ne.s32.totalorder %s87, %s103
    %p105 = scmp.eq.s32.totalorder %s15, 0
    %p106 = por %p104, %p105
    %s107 = ssub.s32 %s16, %s28
    %s108 = ssub.s32 %s17, %s24
    %s109 = sor.u32 %s107, %s108
    %p110 = scmp.eq.s32.totalorder %s109, 0
    %s112 = sadd.s32 %s111, 1
    %s113 = scalar_select %p110, %s111, %s112
    %p116 = pneg %p110
    %p117 = scmp.eq.s32.totalorder %s9, 1
    %p118 = por %p116, %p117
    %p119 = scmp.ne.s32.totalorder %s111, %s114
    %p120 = scmp.eq.s32.totalorder %s9, 0
    %p121 = por %p119, %p120
    %p122 = scmp.ne.s32.totalorder %s111, %s114
    %p123 = scmp.eq.s32.totalorder %s14, 1
    %p124 = por %p122, %p123
    %p125 = scmp.ne.s32.totalorder %s114, %s115
    %p126 = scmp.eq.s32.totalorder %s14, 0
    %p127 = por %p125, %p126
    %p128 = scmp.ne.s32.totalorder %s114, %s115
    %p129 = scmp.eq.s32.totalorder %s15, 1
    %p130 = por %p128, %p129
    %p132 = scmp.ne.s32.totalorder %s115, %s131
    %p133 = scmp.eq.s32.totalorder %s15, 0
    %p134 = por %p132, %p133
    %p135 = scmp.le.s32.totalorder 1, %s9
    %p136 = scmp.lt.s32.totalorder %s9, 3
    %p137 = pnand %p135, %p136
    %p138 = pneg %p137
    // Predicated region
    $region9: #{conv_mean_pool.1} parent=5 // pred_check
      _
    $region10: #{conv_mean_pool.1} parent=5 // pred_check_branch
      %140 = sbr.rel (%p137) target = $region12
    $region11: #{conv_mean_pool.1} parent=5 // pred_region
      %s141 = ssub.s32 %s9, 1
      // Predicated region
      $region13: #{conv_mean_pool.1} parent=11 // pred_check
        %p142 = pneg %p73
      $region14: #{conv_mean_pool.1} parent=11 // pred_check_branch
        %144 = sbr.rel (%p142) target = $region16
      $region15: #{conv_mean_pool.1} parent=11 // pred_region
        %p145 = scmp.lt.s32.totalorder %s19, 0
        %s146 = scalar_select %p145, %s19, 0
        %s147 = smul.addr %s146, 4
        %s148 = scalar_lea.vmem %s1, %s147
      $region16: #{conv_mean_pool.1} parent=11 // pred_fallthru
        _
      // Predicated region
      $region17: #{conv_mean_pool.1} parent=11 // pred_check
        %p149 = pneg %p99
      $region18: #{conv_mean_pool.1} parent=11 // pred_check_branch
        %151 = sbr.rel (%p149) target = $region20
      $region19: #{conv_mean_pool.1} parent=11 // pred_region
        %p152 = scmp.lt.s32.totalorder %s19, 0
        %s153 = scalar_select %p152, %s19, 0
        %s154 = scalar_lea.vmem %s2, %s153
      $region20: #{conv_mean_pool.1} parent=11 // pred_fallthru
        _
    $region12: #{conv_mean_pool.1} parent=5 // pred_fallthru
      _
    %p155 = scmp.lt.s32.totalorder %s9, 2
    // Predicated region
    $region21: #{conv_mean_pool.1} parent=5 // pred_check
      %p156 = pneg %p155
    $region22: #{conv_mean_pool.1} parent=5 // pred_check_branch
      %158 = sbr.rel (%p156) target = $region24
    $region23: #{conv_mean_pool.1} parent=5 // pred_region
      // Predicated region
      $region25: #{conv_mean_pool.1} parent=23 // pred_check
        %p159 = pneg %p41
      $region26: #{conv_mean_pool.1} parent=23 // pred_check_branch
        %161 = sbr.rel (%p159) target = $region28
      $region27: #{conv_mean_pool.1} parent=23 // pred_region
        %s162 = smul.u32 8, %s16
        %p163 = scmp.lt.s32.totalorder %s162, 15
        %s164 = scalar_select %p163, %s162, 15
        %s165 = smul.addr %s164, 4
        %s166 = scalar_lea.vmem %s0, %s165
        %s167 = smul.u32 8, %s16
      $region28: #{conv_mean_pool.1} parent=23 // pred_fallthru
        _
    $region24: #{conv_mean_pool.1} parent=5 // pred_fallthru
      _
    %p168 = scmp.le.s32.totalorder 1, %s9
    %p169 = scmp.lt.s32.totalorder %s9, 3
    %p170 = pnand %p168, %p169
    %p171 = pneg %p170
    // Predicated region
    $region29: #{conv_mean_pool.1} parent=5 // pred_check
      _
    $region30: #{conv_mean_pool.1} parent=5 // pred_check_branch
      %173 = sbr.rel (%p170) target = $region32
    $region31: #{conv_mean_pool.1} parent=5 // pred_region
      %s174 = ssub.s32 %s9, 1
      %s175 = smul.u32 8, %s18
      %p176 = scmp.lt.s32.totalorder %s175, 15
      %s177 = scalar_select %p176, %s175, 15
      %s178 = smul.addr %s177, 4
      %s179 = scalar_lea.vmem %s0, %s178
      %p180 = pneg %p47
      %p181 = pneg %p44
      %p182 = scmp.lt.s32.totalorder %s19, 0
      %s183 = scalar_select %p182, %s19, 0
      %s184 = smul.addr %s183, 4
      %s185 = scalar_lea.vmem %s1, %s184
      %p186 = pneg %p73
      %p187 = pneg %p70
      %p188 = scmp.lt.s32.totalorder %s19, 0
      %s189 = scalar_select %p188, %s19, 0
      %s190 = scalar_lea.vmem %s2, %s189
      %p191 = pneg %p99
      %p192 = pneg %p96
      %p193 = pneg %p127
      %p194 = pneg %p124
      %s195 = smul.u32 8, %s18
      %p196 = scmp.lt.s32.totalorder %s195, 15
      %s197 = scalar_select %p196, %s195, 15
      %p198 = scmp.lt.s32.totalorder %s19, 0
      %s199 = scalar_select %p198, %s19, 0
      %s200 = sadd.s32 %s199, %s197
      %s201 = smul.addr %s200, 8
      %s202 = scalar_lea.vmem %s3, %s201
      %s203 = smul.u32 8, %s18
      %p204 = scmp.lt.s32.totalorder %s203, 15
      %s205 = scalar_select %p204, %s203, 15
      %s206 = smul.addr %s205, 4
      %s207 = scalar_lea.vmem %s0, %s206
      %s208 = smul.u32 8, %s18
      %p209 = scmp.lt.s32.totalorder %s19, 0
      %s210 = scalar_select %p209, %s19, 0
      %s211 = smul.addr %s210, 4
      %s212 = scalar_lea.vmem %s1, %s211
      %p213 = scmp.lt.s32.totalorder %s19, 0
      %s214 = scalar_select %p213, %s19, 0
      %s215 = scalar_lea.vmem %s2, %s214
      %s216 = smul.u32 8, %s18
      %p217 = scmp.lt.s32.totalorder %s216, 15
      %s218 = scalar_select %p217, %s216, 15
      %p219 = scmp.lt.s32.totalorder %s19, 0
      %s220 = scalar_select %p219, %s19, 0
      %s221 = sadd.s32 %s220, %s218
      %s222 = smul.addr %s221, 8
      %s223 = scalar_lea.vmem %s3, %s222
      %s224 = smul.u32 8, %s18
      %v226 = vld [vmem:[%s207] sm:$0xf]
      %v227 = vld [vmem:[%s207 + $0x4] sm:$0xf]
      %v228 = vld [vmem:[%s207 + $0x8] sm:$0xf]
      %v229 = vld [vmem:[%s207 + $0xc] sm:$0xf]
      %v230 = vld [vmem:[%s207 + $0x10] sm:$0xf]
      %v231 = vld [vmem:[%s207 + $0x14] sm:$0xf]
      %v232 = vld [vmem:[%s207 + $0x18] sm:$0xf]
      %v233 = vld [vmem:[%s207 + $0x1c] sm:$0xf]
      %v234 = vld [vmem:[%s212] sm:$0xf]
      %v235 = vld [vmem:[%s212 + $0x4] sm:$0xf]
      %v236 = vld [vmem:[%s212 + $0x8] sm:$0xf]
      %v237 = vld [vmem:[%s212 + $0xc] sm:$0xf]
      %v238 = vld [vmem:[%s212 + $0x10] sm:$0xf]
      %v239 = vld [vmem:[%s212 + $0x14] sm:$0xf]
      %v240 = vld [vmem:[%s212 + $0x18] sm:$0xf]
      %v241 = vld [vmem:[%s212 + $0x1c] sm:$0xf]
      %v242 = vld [vmem:[%s212 + $0x20] sm:$0xf]
      %v243 = vld [vmem:[%s212 + $0x24] sm:$0xf]
      %v244 = vld [vmem:[%s212 + $0x28] sm:$0xf]
      %v245 = vld [vmem:[%s212 + $0x2c] sm:$0xf]
      %v246 = vld [vmem:[%s212 + $0x30] sm:$0xf]
      %v247 = vld [vmem:[%s212 + $0x34] sm:$0xf]
      %v248 = vld [vmem:[%s212 + $0x38] sm:$0xf]
      %v249 = vld [vmem:[%s212 + $0x3c] sm:$0xf]
      %v250 = vld [vmem:[%s215] sm:$0x1]
      %v252 = vlaneseq
      %v253 = vshrl.u32 %v252, 7
      %v254 = vsub.s32 0, %v253
      %v255 = vrot.slane %v250, %v254
      %v265 = vunpack.c.l.b16 %v226
      %v266 = vunpack.c.l.b16 %v227
      %v267 = vunpack.c.l.b16 %v228
      %v268 = vunpack.c.l.b16 %v229
      %v269 = vunpack.c.l.b16 %v230
      %v270 = vunpack.c.l.b16 %v231
      %v271 = vunpack.c.l.b16 %v232
      %v272 = vunpack.c.l.b16 %v233
      %v273 = vpack.c.b16 %v266, %v265
      %v274 = vpack.c.b16 %v268, %v267
      %v275 = vpack.c.b16 %v270, %v269
      %v276 = vpack.c.b16 %v272, %v271
      %v297 = vunpack.c.l.b16 %v234
      %v298 = vunpack.c.l.b16 %v235
      %v299 = vunpack.c.l.b16 %v236
      %v300 = vunpack.c.l.b16 %v237
      %v301 = vunpack.c.l.b16 %v238
      %v302 = vunpack.c.l.b16 %v239
      %v303 = vunpack.c.l.b16 %v240
      %v304 = vunpack.c.l.b16 %v241
      %v305 = vunpack.c.l.b16 %v242
      %v306 = vunpack.c.l.b16 %v243
      %v307 = vunpack.c.l.b16 %v244
      %v308 = vunpack.c.l.b16 %v245
      %v309 = vunpack.c.l.b16 %v246
      %v310 = vunpack.c.l.b16 %v247
      %v311 = vunpack.c.l.b16 %v248
      %v312 = vunpack.c.l.b16 %v249
      %v313 = vpack.c.b16 %v298, %v297
      %v314 = vpack.c.b16 %v300, %v299
      %v315 = vpack.c.b16 %v302, %v301
      %v316 = vpack.c.b16 %v304, %v303
      %v317 = vpack.c.b16 %v306, %v305
      %v318 = vpack.c.b16 %v308, %v307
      %v319 = vpack.c.b16 %v310, %v309
      %v320 = vpack.c.b16 %v312, %v311
      %329 = vmatprep.subr.bf16.mxu0 0
      %330 = vmatpush1.bf16.msra.mxu0 %v313
      %331 = vmatprep.subr.bf16.mxu0 0
      %332 = vmatpush1.bf16.msra.mxu0 %v314
      %333 = vmatprep.subr.bf16.mxu0 0
      %334 = vmatpush1.bf16.msra.mxu0 %v315
      %335 = vmatprep.subr.bf16.mxu0 0
      %336 = vmatpush1.bf16.msra.mxu0 %v316
      %337 = vmatprep.subr.bf16.mxu0 0
      %338 = vmatpush1.bf16.msra.mxu0 %v317
      %339 = vmatprep.subr.bf16.mxu0 0
      %340 = vmatpush1.bf16.msra.mxu0 %v318
      %341 = vmatprep.subr.bf16.mxu0 0
      %342 = vmatpush1.bf16.msra.mxu0 %v319
      %343 = vmatprep.subr.bf16.mxu0 0
      %344 = vmatpush1.bf16.msra.mxu0 %v320
      %345 = vmatprep.subr.bf16.mxu0 0
      %346 = vmatpush1.bf16.msra.mxu0 0
      %347 = vmatprep.subr.bf16.mxu0 0
      %348 = vmatpush1.bf16.msra.mxu0 0
      %349 = vmatprep.subr.bf16.mxu0 0
      %350 = vmatpush1.bf16.msra.mxu0 0
      %351 = vmatprep.subr.bf16.mxu0 0
      %352 = vmatpush1.bf16.msra.mxu0 0
      %353 = vmatprep.subr.bf16.mxu0 0
      %354 = vmatpush1.bf16.msra.mxu0 0
      %355 = vmatprep.subr.bf16.mxu0 0
      %356 = vmatpush1.bf16.msra.mxu0 0
      %357 = vmatprep.subr.bf16.mxu0 0
      %358 = vmatpush1.bf16.msra.mxu0 0
      %359 = vmatprep.subr.bf16.mxu0 0
      %360 = vmatpush1.bf16.msra.mxu0 0
      %361 = vmatprep.mubr.bf16.mxu0 0
      %362 = vmatmul.mubr.bf16.gmra.mrb[0].mxu0 %v273
      %v363 = vpop.f32.mrb[0].mxu0
      %v364 = vadd.f32 %v255, %v363
      %v365 = vpop.f32.mrb[0].mxu0
      %v366 = vpop.f32.mrb[0].mxu0
      %v367 = vadd.f32 %v255, %v366
      %v368 = vpop.f32.mrb[0].mxu0
      %369 = vmatprep.mubr.bf16.mxu0 0
      %370 = vmatmul.mubr.bf16.gmra.mrb[0].mxu0 %v274
      %v371 = vpop.f32.mrb[0].mxu0
      %v372 = vadd.f32 %v255, %v371
      %v373 = vpop.f32.mrb[0].mxu0
      %v374 = vpop.f32.mrb[0].mxu0
      %v375 = vadd.f32 %v255, %v374
      %v376 = vpop.f32.mrb[0].mxu0
      %377 = vmatprep.mubr.bf16.mxu0 0
      %378 = vmatmul.mubr.bf16.gmra.mrb[0].mxu0 %v275
      %v379 = vpop.f32.mrb[0].mxu0
      %v380 = vadd.f32 %v255, %v379
      %v381 = vpop.f32.mrb[0].mxu0
      %v382 = vpop.f32.mrb[0].mxu0
      %v383 = vadd.f32 %v255, %v382
      %v384 = vpop.f32.mrb[0].mxu0
      %385 = vmatprep.mubr.bf16.mxu0 0
      %386 = vmatmul.mubr.bf16.gmra.mrb[0].mxu0 %v276
      %v387 = vpop.f32.mrb[0].mxu0
      %v388 = vadd.f32 %v255, %v387
      %v389 = vpop.f32.mrb[0].mxu0
      %v390 = vpop.f32.mrb[0].mxu0
      %v391 = vadd.f32 %v255, %v390
      %v392 = vpop.f32.mrb[0].mxu0
      %393 = vdwg.mxu0
      %394 = vst [vmem:[%s223] sm:$0xff] %v364
      %395 = vst [vmem:[%s223 + $0x8] sm:$0xff] %v367
      %396 = vst [vmem:[%s223 + $0x10] sm:$0xff] %v372
      %397 = vst [vmem:[%s223 + $0x18] sm:$0xff] %v375
      %398 = vst [vmem:[%s223 + $0x20] sm:$0xff] %v380
      %399 = vst [vmem:[%s223 + $0x28] sm:$0xff] %v383
      %400 = vst [vmem:[%s223 + $0x30] sm:$0xff] %v388
      %401 = vst [vmem:[%s223 + $0x38] sm:$0xff] %v391
      %s402 = smul.u32 8, %s18
      %p403 = scmp.lt.s32.totalorder %s402, 15
      %s404 = scalar_select %p403, %s402, 15
      %p405 = scmp.lt.s32.totalorder %s19, 0
      %s406 = scalar_select %p405, %s19, 0
      %s407 = sadd.s32 %s406, %s404
      %s408 = smul.addr %s407, 8
      %s409 = scalar_lea.vmem %s3, %s408
      // Predicated region
      $region33: #{conv_mean_pool.1} parent=31 // pred_check
        %p410 = pneg %p124
      $region34: #{conv_mean_pool.1} parent=31 // pred_check_branch
        %412 = sbr.rel (%p410) target = $region36
      $region35: #{conv_mean_pool.1} parent=31 // pred_region
        %s413 = smul.u32 8, %s18
      $region36: #{conv_mean_pool.1} parent=31 // pred_fallthru
        _
    $region32: #{conv_mean_pool.1} parent=5 // pred_fallthru
      _
    %p414 = scmp.le.s32.totalorder 2, %s9
    // Predicated region
    $region37: #{conv_mean_pool.1} parent=5 // pred_check
      %p415 = pneg %p414
    $region38: #{conv_mean_pool.1} parent=5 // pred_check_branch
      %417 = sbr.rel (%p415) target = $region40
    $region39: #{conv_mean_pool.1} parent=5 // pred_region
      %s418 = ssub.s32 %s9, 2
      // Predicated region
      $region41: #{conv_mean_pool.1} parent=39 // pred_check
        %p419 = pneg %p130
      $region42: #{conv_mean_pool.1} parent=39 // pred_check_branch
        %421 = sbr.rel (%p419) target = $region44
      $region43: #{conv_mean_pool.1} parent=39 // pred_region
        %s422 = smul.u32 8, %s20
        %p423 = scmp.lt.s32.totalorder %s422, 15
        %s424 = scalar_select %p423, %s422, 15
        %p425 = scmp.lt.s32.totalorder %s21, 0
        %s426 = scalar_select %p425, %s21, 0
        %s427 = sadd.s32 %s426, %s424
        %s428 = smul.addr %s427, 8
        %s429 = scalar_lea.vmem %s3, %s428
      $region44: #{conv_mean_pool.1} parent=39 // pred_fallthru
        _
    $region40: #{conv_mean_pool.1} parent=5 // pred_fallthru
      _
  $region6: #{conv_mean_pool.1} parent=0 // loop_footer
    %s13 = sadd.s32 1, %s9
  $region7: #{conv_mean_pool.1} parent=0 // loop_footer_branch
    %8 = sbr.rel target = $region3
  $region8: #{conv_mean_pool.1} parent=0 // loop_exit
    _

</llo_original>
